<compile_context>
chip_gen: v7x
topology: tpu7x:2x2x1
jax: 0.10.0
libtpu: 0.0.40
codegen_flags: <defaults>
</compile_context>

<pallas_src>
import jax
import jax.numpy as jnp
from jax.experimental import pallas as pl
from jax.experimental.pallas import tpu as pltpu

B, S, H, V = 2, 8, 32, 50
BS = B * S
LANE = 128


def _vmem_spec():
    return pl.BlockSpec(memory_space=pltpu.MemorySpace.VMEM)


def _smem_spec():
    return pl.BlockSpec(memory_space=pltpu.MemorySpace.SMEM)


def fused_halo_kernel(ids_ref, mask_ref, embed_ref, w_t_ref, b_t_ref,
                      w_ct_ref, labels_ref, b_c_ref,
                      hidden_ref, logits_ref, loss_ref):
    # ---- 1) synthetic transformer body: one-hot gather + dense + tanh ------
    # Embedding gather as a single MXU matmul: (BS,V) one-hot @ (V,H) table.
    # bf16 operands (MXU-native on v5e/v6e/v7x), f32 accumulate.
    vocab_iota = jax.lax.broadcasted_iota(jnp.int32, (BS, V), 1)
    one_hot = (vocab_iota == ids_ref[...]).astype(jnp.bfloat16)        # (BS,V)
    x = jnp.dot(one_hot, embed_ref[...].astype(jnp.bfloat16),
                preferred_element_type=jnp.float32)                    # (BS,H)

    # Dense + tanh: bf16 MXU inputs, f32 accumulation, f32 EUP tanh.
    h = jnp.tanh(
        jnp.dot(x.astype(jnp.bfloat16), w_t_ref[...].astype(jnp.bfloat16),
                preferred_element_type=jnp.float32) + b_t_ref[...])    # (BS,H) f32

    # Lane-dense hidden writeback: pad H=32 -> 128 lanes so every row store is
    # an unmasked vst (wrapper slices [:, :H]).
    hidden_ref[...] = jnp.concatenate(
        [h, jnp.zeros((BS, LANE - H), jnp.float32)], axis=-1)          # (BS,128)

    # ---- 2) get_last_masked_embedding -------------------------------------
    # For a 0/1 mask, (cumsum(mask)*mask != 0).sum() == sum(mask): one XLU
    # lane reduce, clamped to S-1 (see semantics note above).  Pool directly
    # from the in-register h with an exact f32 one-hot row-select matmul — no
    # VMEM store->load round trip, no masked sub-tile copies.
    lp = jnp.sum(mask_ref[...], axis=-1, keepdims=True).astype(jnp.int32)
    lp = jnp.minimum(lp, S - 1)                                        # (B,1)
    col = jax.lax.broadcasted_iota(jnp.int32, (B, BS), 1)
    bidx = jax.lax.broadcasted_iota(jnp.int32, (B, BS), 0)
    sel = (col == bidx * S + lp).astype(jnp.float32)                   # (B,BS)
    pooled = jnp.dot(sel, h, preferred_element_type=jnp.float32)       # (B,H), exact select

    # ---- 3) classifier Linear(H, 1) as VPU mul + lane reduce ---------------
    # w_c arrives transposed as (1,H); avoids an N=1 MXU matmul and its
    # masked (H,1)/(B,1) operands.  b_c is an SMEM scalar.
    logits = (jnp.sum(pooled * w_ct_ref[...], axis=-1, keepdims=True)
              + b_c_ref[0])                                            # (B,1)
    logits_lane = jnp.broadcast_to(logits, (B, LANE))
    logits_ref[...] = logits_lane                                      # lane-dense

    # ---- 4) binary_cross_entropy_with_logits, mean reduction ---------------
    # labels arrive lane-broadcast; every row of loss_elem is lane-constant so
    # the global mean equals the per-batch mean.  All math stays f32.
    y = labels_ref[...]                                                # (B,128)
    loss_elem = (jnp.maximum(logits_lane, 0.0) - logits_lane * y
                 + jnp.log(1.0 + jnp.exp(-jnp.abs(logits_lane))))
    loss_ref[...] = jnp.broadcast_to(jnp.mean(loss_elem).reshape(1, 1), (1, LANE))


def fine_tuned_halo_forward(params, input_ids, attention_mask, labels=None):
    ids_col = input_ids.reshape(BS, 1).astype(jnp.int32)
    mask_f = attention_mask.reshape(B, S).astype(jnp.float32)
    labels_arr = (labels if labels is not None else jnp.zeros((B,), jnp.float32))
    labels_lane = jnp.broadcast_to(
        labels_arr.astype(jnp.float32).reshape(B, 1), (B, LANE))
    w_ct = params["w_c"].reshape(1, H).astype(jnp.float32)     # (H,1) -> (1,H)
    b_c_s = params["b_c"].reshape(1).astype(jnp.float32)       # SMEM scalar

    hidden_pad, logits_tile, loss_tile = pl.pallas_call(
        fused_halo_kernel,
        out_shape=(jax.ShapeDtypeStruct((BS, LANE), jnp.float32),
                   jax.ShapeDtypeStruct((B, LANE), jnp.float32),
                   jax.ShapeDtypeStruct((1, LANE), jnp.float32)),
        in_specs=[_vmem_spec(),    # token ids, (BS,1) int32
                  _vmem_spec(),    # attention mask, (B,S) f32
                  _vmem_spec(),    # embedding table (V,H)
                  _vmem_spec(),    # w_t (H,H)
                  _vmem_spec(),    # b_t (1,H)
                  _vmem_spec(),    # w_c^T (1,H)
                  _vmem_spec(),    # labels, lane-dense (B,128)
                  _smem_spec()],   # b_c scalar (1,)
        out_specs=(_vmem_spec(), _vmem_spec(), _vmem_spec()),
    )(ids_col, mask_f, params["embed"], params["w_t"], params["b_t"],
      w_ct, labels_lane, b_c_s)

    hidden_states = hidden_pad[:, :H].reshape(B, S, H)
    logits = logits_tile[:, 0]                 # logits.squeeze(1)
    out = {"logits": logits, "hidden_states": hidden_states}
    if labels is not None:
        out["loss"] = loss_tile[0, 0]
    return out


def _reference(params, input_ids, attention_mask, labels):
    # pure-JAX f32 reference of the same forward (correctness check)
    x = params["embed"][input_ids]
    hs = jnp.tanh(x.reshape(BS, H) @ params["w_t"] + params["b_t"]).reshape(B, S, H)
    m = attention_mask.astype(jnp.float32)
    lp = jnp.sum((jnp.cumsum(m, axis=1) * m) != 0, axis=1).astype(jnp.int32)
    pooled = hs[jnp.arange(B), lp]
    logits = (pooled @ params["w_c"] + params["b_c"]).reshape(B)
    y = labels.astype(jnp.float32)
    loss = jnp.mean(jnp.maximum(logits, 0.0) - logits * y
                    + jnp.log(1.0 + jnp.exp(-jnp.abs(logits))))
    return logits, loss, hs


if __name__ == "__main__":
    key = jax.random.PRNGKey(0)
    k_emb, k_wt, k_bt, k_wc, k_bc, k_ids = jax.random.split(key, 6)

    params = {
        "embed": 0.02 * jax.random.normal(k_emb, (V, H), jnp.float32),
        "w_t": 0.05 * jax.random.normal(k_wt, (H, H), jnp.float32),
        "b_t": 0.01 * jax.random.normal(k_bt, (1, H), jnp.float32),
        "w_c": 0.05 * jax.random.normal(k_wc, (H, 1), jnp.float32),
        "b_c": 0.01 * jax.random.normal(k_bc, (1, 1), jnp.float32),
    }

    input_ids = jax.random.randint(k_ids, (B, S), 0, V, jnp.int32)
    # sequence lengths strictly < S (the PyTorch code indexes position ==
    # count-of-ones, so a fully-unmasked row would be out of bounds there too)
    lengths = jnp.array([5, 7], jnp.int32)
    attention_mask = (jnp.arange(S)[None, :] < lengths[:, None]).astype(jnp.int32)
    labels = jnp.array([1.0, 0.0], jnp.float32)

    out = fine_tuned_halo_forward(params, input_ids, attention_mask, labels)
    jax.block_until_ready(out)

    ref_logits, ref_loss, ref_hs = _reference(params, input_ids, attention_mask, labels)
    assert jnp.allclose(out["logits"], ref_logits, rtol=1e-3, atol=1e-3)
    assert jnp.allclose(out["loss"], ref_loss, rtol=1e-3, atol=1e-3)
    assert jnp.allclose(out["hidden_states"], ref_hs, rtol=1e-3, atol=1e-3)

    print("KERNEL_OK")
</pallas_src>

<mosaic_0001>
module attributes {stable_mosaic.version = 11 : i64} {
  func.func @fused_halo_kernel(%arg0: memref<16x1xi32, #tpu.memory_space<vmem>>, %arg1: memref<2x8xf32, #tpu.memory_space<vmem>>, %arg2: memref<50x32xf32, #tpu.memory_space<vmem>>, %arg3: memref<32x32xf32, #tpu.memory_space<vmem>>, %arg4: memref<1x32xf32, #tpu.memory_space<vmem>>, %arg5: memref<1x32xf32, #tpu.memory_space<vmem>>, %arg6: memref<2x128xf32, #tpu.memory_space<vmem>>, %arg7: memref<1xf32, #tpu.memory_space<smem>>, %arg8: memref<16x128xf32, #tpu.memory_space<vmem>>, %arg9: memref<2x128xf32, #tpu.memory_space<vmem>>, %arg10: memref<1x128xf32, #tpu.memory_space<vmem>>) attributes {dimension_semantics = [], scalar_prefetch = 0 : i64, scratch_operands = 0 : i64, tpu.core_type = #tpu.core_type<tc>} {
    %0 = tpu.iota {dimensions = array<i32: 1>} : vector<16x50xi32>
    %c0 = arith.constant 0 : index
    %c0_0 = arith.constant 0 : index
    %1 = vector.load %arg0[%c0, %c0_0] : memref<16x1xi32, #tpu.memory_space<vmem>>, vector<16x1xi32>
    %2 = vector.broadcast %1 : vector<16x1xi32> to vector<16x50xi32>
    %3 = arith.cmpi eq, %0, %2 : vector<16x50xi32>
    %4 = arith.extui %3 : vector<16x50xi1> to vector<16x50xi32>
    %5 = arith.sitofp %4 : vector<16x50xi32> to vector<16x50xf32>
    %6 = arith.truncf %5 : vector<16x50xf32> to vector<16x50xbf16>
    %c0_1 = arith.constant 0 : index
    %c0_2 = arith.constant 0 : index
    %7 = vector.load %arg2[%c0_1, %c0_2] : memref<50x32xf32, #tpu.memory_space<vmem>>, vector<50x32xf32>
    %8 = arith.truncf %7 : vector<50x32xf32> to vector<50x32xbf16>
    %cst = arith.constant dense<0.000000e+00> : vector<16x32xf32>
    %9 = tpu.matmul %6, %8, %cst {dimension_numbers = #tpu.dot_dimension_numbers<[1], [0], [0], [1], [0, 0, 1, 1], [], []>} : vector<16x50xbf16>, vector<50x32xbf16>, vector<16x32xf32> -> vector<16x32xf32>
    %10 = arith.truncf %9 : vector<16x32xf32> to vector<16x32xbf16>
    %c0_3 = arith.constant 0 : index
    %c0_4 = arith.constant 0 : index
    %11 = vector.load %arg3[%c0_3, %c0_4] : memref<32x32xf32, #tpu.memory_space<vmem>>, vector<32x32xf32>
    %12 = arith.truncf %11 : vector<32x32xf32> to vector<32x32xbf16>
    %cst_5 = arith.constant dense<0.000000e+00> : vector<16x32xf32>
    %13 = tpu.matmul %10, %12, %cst_5 {dimension_numbers = #tpu.dot_dimension_numbers<[1], [0], [0], [1], [0, 0, 1, 1], [], []>} : vector<16x32xbf16>, vector<32x32xbf16>, vector<16x32xf32> -> vector<16x32xf32>
    %c0_6 = arith.constant 0 : index
    %c0_7 = arith.constant 0 : index
    %14 = vector.load %arg4[%c0_6, %c0_7] : memref<1x32xf32, #tpu.memory_space<vmem>>, vector<1x32xf32>
    %15 = vector.broadcast %14 : vector<1x32xf32> to vector<16x32xf32>
    %16 = arith.addf %13, %15 : vector<16x32xf32>
    %17 = math.tanh %16 : vector<16x32xf32>
    %cst_8 = arith.constant 0.000000e+00 : f32
    %18 = vector.broadcast %cst_8 : f32 to vector<16x96xf32>
    %19 = tpu.concatenate %17, %18 in 1 : vector<16x32xf32>, vector<16x96xf32> -> vector<16x128xf32>
    %c0_9 = arith.constant 0 : index
    %c0_10 = arith.constant 0 : index
    %20 = vector.load %arg8[%c0_9, %c0_10] : memref<16x128xf32, #tpu.memory_space<vmem>>, vector<16x128xf32>
    tpu.vector_store %arg8[%c0_9, %c0_10], %19 {strides = array<i32>} : memref<16x128xf32, #tpu.memory_space<vmem>>, vector<16x128xf32>,
    %c0_11 = arith.constant 0 : index
    %c0_12 = arith.constant 0 : index
    %21 = vector.load %arg1[%c0_11, %c0_12] : memref<2x8xf32, #tpu.memory_space<vmem>>, vector<2x8xf32>
    %cst_13 = arith.constant dense<0.000000e+00> : vector<2xf32>
    %22 = vector.multi_reduction <add>, %21, %cst_13 [1] : vector<2x8xf32> to vector<2xf32>
    %23 = vector.shape_cast %22 : vector<2xf32> to vector<2x1xf32>
    %24 = arith.fptosi %23 : vector<2x1xf32> to vector<2x1xi32>
    %c7_i32 = arith.constant 7 : i32
    %25 = vector.broadcast %c7_i32 : i32 to vector<2x1xi32>
    %26 = arith.minsi %24, %25 : vector<2x1xi32>
    %27 = tpu.iota {dimensions = array<i32: 1>} : vector<2x16xi32>
    %28 = tpu.iota {dimensions = array<i32: 0>} : vector<2x16xi32>
    %c8_i32 = arith.constant 8 : i32
    %29 = vector.broadcast %c8_i32 : i32 to vector<2x16xi32>
    %30 = arith.muli %28, %29 : vector<2x16xi32>
    %31 = vector.broadcast %26 : vector<2x1xi32> to vector<2x16xi32>
    %32 = arith.addi %30, %31 : vector<2x16xi32>
    %33 = arith.cmpi eq, %27, %32 : vector<2x16xi32>
    %34 = arith.extui %33 : vector<2x16xi1> to vector<2x16xi32>
    %35 = arith.sitofp %34 : vector<2x16xi32> to vector<2x16xf32>
    %cst_14 = arith.constant dense<0.000000e+00> : vector<2x32xf32>
    %36 = tpu.matmul %35, %17, %cst_14 {dimension_numbers = #tpu.dot_dimension_numbers<[1], [0], [0], [1], [0, 0, 1, 1], [], []>} : vector<2x16xf32>, vector<16x32xf32>, vector<2x32xf32> -> vector<2x32xf32>
    %c0_15 = arith.constant 0 : index
    %c0_16 = arith.constant 0 : index
    %37 = vector.load %arg5[%c0_15, %c0_16] : memref<1x32xf32, #tpu.memory_space<vmem>>, vector<1x32xf32>
    %38 = vector.broadcast %37 : vector<1x32xf32> to vector<2x32xf32>
    %39 = arith.mulf %36, %38 : vector<2x32xf32>
    %cst_17 = arith.constant dense<0.000000e+00> : vector<2xf32>
    %40 = vector.multi_reduction <add>, %39, %cst_17 [1] : vector<2x32xf32> to vector<2xf32>
    %41 = vector.shape_cast %40 : vector<2xf32> to vector<2x1xf32>
    %c0_18 = arith.constant 0 : index
    %42 = memref.load %arg7[%c0_18] : memref<1xf32, #tpu.memory_space<smem>>
    %43 = vector.broadcast %42 : f32 to vector<2x1xf32>
    %44 = arith.addf %41, %43 : vector<2x1xf32>
    %45 = vector.shape_cast %44 : vector<2x1xf32> to vector<2x1xf32>
    %46 = vector.broadcast %45 : vector<2x1xf32> to vector<2x128xf32>
    %c0_19 = arith.constant 0 : index
    %c0_20 = arith.constant 0 : index
    %47 = vector.load %arg9[%c0_19, %c0_20] : memref<2x128xf32, #tpu.memory_space<vmem>>, vector<2x128xf32>
    tpu.vector_store %arg9[%c0_19, %c0_20], %46 {strides = array<i32>} : memref<2x128xf32, #tpu.memory_space<vmem>>, vector<2x128xf32>,
    %c0_21 = arith.constant 0 : index
    %c0_22 = arith.constant 0 : index
    %48 = vector.load %arg6[%c0_21, %c0_22] : memref<2x128xf32, #tpu.memory_space<vmem>>, vector<2x128xf32>
    %cst_23 = arith.constant 0.000000e+00 : f32
    %49 = vector.broadcast %cst_23 : f32 to vector<2x128xf32>
    %50 = arith.maximumf %46, %49 : vector<2x128xf32>
    %51 = arith.mulf %46, %48 : vector<2x128xf32>
    %52 = arith.subf %50, %51 : vector<2x128xf32>
    %53 = math.absf %46 : vector<2x128xf32>
    %cst_24 = arith.constant 0.000000e+00 : f32
    %54 = vector.broadcast %cst_24 : f32 to vector<2x128xf32>
    %55 = arith.subf %54, %53 : vector<2x128xf32>
    %56 = math.exp %55 : vector<2x128xf32>
    %cst_25 = arith.constant 1.000000e+00 : f32
    %57 = vector.broadcast %cst_25 : f32 to vector<2x128xf32>
    %58 = arith.addf %57, %56 : vector<2x128xf32>
    %59 = math.log %58 : vector<2x128xf32>
    %60 = arith.addf %52, %59 : vector<2x128xf32>
    %61 = vector.shape_cast %60 : vector<2x128xf32> to vector<1x2x128xf32>
    %cst_26 = arith.constant dense<0.000000e+00> : vector<1xf32>
    %62 = vector.multi_reduction <add>, %61, %cst_26 [1, 2] : vector<1x2x128xf32> to vector<1xf32>
    %63 = vector.shape_cast %62 : vector<1xf32> to vector<1x1x1xf32>
    %64 = vector.extract %63[0, 0, 0] : f32 from vector<1x1x1xf32>
    %cst_27 = arith.constant 2.560000e+02 : f32
    %65 = arith.divf %64, %cst_27 : f32
    %66 = vector.broadcast %65 : f32 to vector<1x1xf32>
    %67 = vector.shape_cast %66 : vector<1x1xf32> to vector<1x1xf32>
    %68 = vector.broadcast %67 : vector<1x1xf32> to vector<1x128xf32>
    %c0_28 = arith.constant 0 : index
    %c0_29 = arith.constant 0 : index
    %69 = vector.load %arg10[%c0_28, %c0_29] : memref<1x128xf32, #tpu.memory_space<vmem>>, vector<1x128xf32>
    tpu.vector_store %arg10[%c0_28, %c0_29], %68 {strides = array<i32>} : memref<1x128xf32, #tpu.memory_space<vmem>>, vector<1x128xf32>,
    return
  }
}

</mosaic_0001>

<llo_original>
// kernel: tpu_custom_call.1
$region0: #{tpu_custom_call.1}
  #allocation0 [shape = 'u32[]', space=smem, size = 0x4, offset = 0x4, fixed_abs, tag = 'smem constant byte address 0x4 - core index']
  #allocation1 [shape = 'u32[144,128]{1,0:T(1,128)}', space=vmem, size = 0x12000, scoped, tag = 'internal scratch']
  #allocation2 [shape = 'f32[1]{0:T(128)S(6)}', space=smem, size = 0x200, scoped, tag = 'scoped memory for tpu_custom_call.1']
  %s0 = inlined_call_operand.vmem [shape: s32[16,1], index: 0, kind: input, shape index: {}]
  %s1 = inlined_call_operand.vmem [shape: f32[2,8], index: 1, kind: input, shape index: {}]
  %s2 = inlined_call_operand.vmem [shape: f32[50,32], index: 2, kind: input, shape index: {}]
  %s3 = inlined_call_operand.vmem [shape: f32[32,32], index: 3, kind: input, shape index: {}]
  %s4 = inlined_call_operand.vmem [shape: f32[1,32], index: 4, kind: input, shape index: {}]
  %s5 = inlined_call_operand.vmem [shape: f32[1,32], index: 5, kind: input, shape index: {}]
  %s6 = inlined_call_operand.vmem [shape: f32[2,128], index: 6, kind: input, shape index: {}]
  %s7 = inlined_call_operand.<no memory space> [shape: f32[1], index: 7, kind: input, shape index: {}]
  %s8 = inlined_call_operand.hbm [shape: f32[16,128], index: 8, kind: output, shape index: {0}]
  %s9 = inlined_call_operand.hbm [shape: f32[2,128], index: 9, kind: output, shape index: {1}]
  %s10 = inlined_call_operand.hbm [shape: f32[1,128], index: 10, kind: output, shape index: {2}]
  %11 = xla_tuple %s8, %s9, %s10
  %s12 = sld [smem:[#allocation0]]
  $region58: #{tpu_custom_call.1} parent=0
    _
  %s14 = ssub.s32 1, %s12
  %s15 = scalar_select 0, %s14, %s12
  %16 = sst [smem:[#allocation2]] %s7
  $region1: #{tpu_custom_call.1} parent=0
    #allocation3 [shape = 'u8[8192]{0}', space=vmem, size = 0x2000, scoped, tag = 'output window, operand 0, single buffered']
    #allocation4 [shape = 's32[1]{0}', space=sflag, size = 0x4, scoped, tag = 'scoped memory for tpu_custom_call.1']
    #allocation5 [shape = 'u8[1024]{0}', space=vmem, size = 0x400, scoped, tag = 'output window, operand 1, single buffered']
    #allocation6 [shape = 's32[1]{0}', space=sflag, size = 0x4, scoped, tag = 'scoped memory for tpu_custom_call.1']
    #allocation7 [shape = 'u8[512]{0}', space=vmem, size = 0x400, scoped, tag = 'output window, operand 2, single buffered']
    %17 = vsyncpa [#allocation4], 0
    %18 = vsyncpa [#allocation6], 0
    // Predicated region
    $region2: #{tpu_custom_call.1} parent=1 // pred_check
      _
    $region3: #{tpu_custom_call.1} parent=1 // pred_check_branch
      %20 = sbr.rel (0) target = $region5
    $region4: #{tpu_custom_call.1} parent=1 // pred_region
      _
    $region5: #{tpu_custom_call.1} parent=1 // pred_fallthru
      _
    // Predicated region
    $region6: #{tpu_custom_call.1} parent=1 // pred_check
      _
    $region7: #{tpu_custom_call.1} parent=1 // pred_check_branch
      %22 = sbr.rel (0) target = $region9
    $region8: #{tpu_custom_call.1} parent=1 // pred_region
      _
    $region9: #{tpu_custom_call.1} parent=1 // pred_fallthru
      _
    // Predicated region
    $region10: #{tpu_custom_call.1} parent=1 // pred_check
      _
    $region11: #{tpu_custom_call.1} parent=1 // pred_check_branch
      %24 = sbr.rel (0) target = $region13
    $region12: #{tpu_custom_call.1} parent=1 // pred_region
      _
    $region13: #{tpu_custom_call.1} parent=1 // pred_fallthru
      _
    // Predicated region
    $region14: #{tpu_custom_call.1} parent=1 // pred_check
      _
    $region15: #{tpu_custom_call.1} parent=1 // pred_check_branch
      %26 = sbr.rel (0) target = $region17
    $region16: #{tpu_custom_call.1} parent=1 // pred_region
      _
    $region17: #{tpu_custom_call.1} parent=1 // pred_fallthru
      _
    // Predicated region
    $region18: #{tpu_custom_call.1} parent=1 // pred_check
      _
    $region19: #{tpu_custom_call.1} parent=1 // pred_check_branch
      %28 = sbr.rel (0) target = $region21
    $region20: #{tpu_custom_call.1} parent=1 // pred_region
      _
    $region21: #{tpu_custom_call.1} parent=1 // pred_fallthru
      _
    // Predicated region
    $region22: #{tpu_custom_call.1} parent=1 // pred_check
      _
    $region23: #{tpu_custom_call.1} parent=1 // pred_check_branch
      %30 = sbr.rel (0) target = $region25
    $region24: #{tpu_custom_call.1} parent=1 // pred_region
      _
    $region25: #{tpu_custom_call.1} parent=1 // pred_fallthru
      _
    // Predicated region
    $region26: #{tpu_custom_call.1} parent=1 // pred_check
      _
    $region27: #{tpu_custom_call.1} parent=1 // pred_check_branch
      %32 = sbr.rel (0) target = $region29
    $region28: #{tpu_custom_call.1} parent=1 // pred_region
      _
    $region29: #{tpu_custom_call.1} parent=1 // pred_fallthru
      _
    // Predicated region
    $region30: #{tpu_custom_call.1} parent=1 // pred_check
      _
    $region31: #{tpu_custom_call.1} parent=1 // pred_check_branch
      %34 = sbr.rel (0) target = $region33
    $region32: #{tpu_custom_call.1} parent=1 // pred_region
      _
    $region33: #{tpu_custom_call.1} parent=1 // pred_fallthru
      _
    %v36 = vlaneseq
    %v37 = vand.u32 %v36, 127
    %v38 = vld [vmem:[%s0] sm:$0xff]
    %v39 = vld [vmem:[%s0 + $0x8] sm:$0xff]
    %40 = vset.pattern.permute.xlu0 0
    %41 = vperm.xlu0 %40, %v38
    %v42 = vpop.permute.xlu0 %41
    %43 = vset.pattern.permute.xlu0 0
    %44 = vperm.xlu0 %43, %v39
    %v45 = vpop.permute.xlu0 %44
    %vm46 = vcmp.eq.s32.totalorder %v37, %v42
    %vm47 = vcmp.eq.s32.totalorder %v37, %v45
    %v48 = vsel %vm46, 1, 0
    %v49 = vsel %vm47, 1, 0
    %v50 = vcvt.s32.f32 %v48
    %v51 = vcvt.s32.f32 %v49
    %v52 = vpack.c.bf16 %v51, %v50
    %v53 = vld [vmem:[%s2] sm:$0xff]
    %v54 = vld [vmem:[%s2 + $0x8] sm:$0xff]
    %v55 = vld [vmem:[%s2 + $0x10] sm:$0xff]
    %v56 = vld [vmem:[%s2 + $0x18] sm:$0xff]
    %v57 = vld [vmem:[%s2 + $0x20] sm:$0xff]
    %v58 = vld [vmem:[%s2 + $0x28] sm:$0xff]
    %v59 = vld [vmem:[%s2 + $0x30] sm:$0x3]
    %v60 = vpack.c.bf16 %v54, %v53
    %v61 = vpack.c.bf16 %v56, %v55
    %v62 = vpack.c.bf16 %v58, %v57
    %v63 = vpack.c.bf16 %v59, %v59
    %vm64 = vcmask 408576
    %v66 = vsel %vm64, %v52, 0
    %vm68 = vcmask 1040384
    %v70 = vsel %vm68, %v63, 0
    %72 = vmatprep.subr.bf16.mxu0 0
    %73 = vmatpush1.bf16.msra.mxu0 %v60
    %74 = vmatprep.subr.bf16.mxu0 0
    %75 = vmatpush1.bf16.msra.mxu0 %v61
    %76 = vmatprep.subr.bf16.mxu0 0
    %77 = vmatpush1.bf16.msra.mxu0 %v62
    %78 = vmatprep.subr.bf16.mxu0 0
    %79 = vmatpush1.bf16.msra.mxu0 %v70
    %80 = vmatprep.subr.bf16.mxu0 0
    %81 = vmatpush1.bf16.msra.mxu0 0
    %82 = vmatprep.subr.bf16.mxu0 0
    %83 = vmatpush1.bf16.msra.mxu0 0
    %84 = vmatprep.subr.bf16.mxu0 0
    %85 = vmatpush1.bf16.msra.mxu0 0
    %86 = vmatprep.subr.bf16.mxu0 0
    %87 = vmatpush1.bf16.msra.mxu0 0
    %88 = vmatprep.subr.bf16.mxu0 0
    %89 = vmatpush1.bf16.msra.mxu0 0
    %90 = vmatprep.subr.bf16.mxu0 0
    %91 = vmatpush1.bf16.msra.mxu0 0
    %92 = vmatprep.subr.bf16.mxu0 0
    %93 = vmatpush1.bf16.msra.mxu0 0
    %94 = vmatprep.subr.bf16.mxu0 0
    %95 = vmatpush1.bf16.msra.mxu0 0
    %96 = vmatprep.subr.bf16.mxu0 0
    %97 = vmatpush1.bf16.msra.mxu0 0
    %98 = vmatprep.subr.bf16.mxu0 0
    %99 = vmatpush1.bf16.msra.mxu0 0
    %100 = vmatprep.subr.bf16.mxu0 0
    %101 = vmatpush1.bf16.msra.mxu0 0
    %102 = vmatprep.subr.bf16.mxu0 0
    %103 = vmatpush1.bf16.msra.mxu0 0
    %104 = vmatprep.mubr.bf16.mxu0 0
    %105 = vmatmul.mubr.bf16.gmra.mrb[0].mxu0 %v66
    %v106 = vpop.f32.mrb[0].mxu0
    %v107 = vadd.f32 0.0, %v106
    %v108 = vpop.f32.mrb[0].mxu0
    %v109 = vpop.f32.mrb[0].mxu0
    %v110 = vadd.f32 0.0, %v109
    %v111 = vpop.f32.mrb[0].mxu0
    %112 = vdwg.mxu0
    %v113 = vpack.c.bf16 %v110, %v107
    %v114 = vld [vmem:[%s3] sm:$0xff]
    %v115 = vld [vmem:[%s3 + $0x8] sm:$0xff]
    %v116 = vld [vmem:[%s3 + $0x10] sm:$0xff]
    %v117 = vld [vmem:[%s3 + $0x18] sm:$0xff]
    %v118 = vpack.c.bf16 %v115, %v114
    %v119 = vpack.c.bf16 %v117, %v116
    %v120 = vld [vmem:[%s4] sm:$0x1]
    %v122 = vlaneseq
    %v123 = vshrl.u32 %v122, 7
    %v124 = vsub.s32 0, %v123
    %v125 = vrot.slane %v120, %v124
    %vm127 = vcmask 261120
    %v129 = vsel %vm127, %v113, 0
    %131 = vmatprep.subr.bf16.mxu0 0
    %132 = vmatpush1.bf16.msra.mxu0 %v118
    %133 = vmatprep.subr.bf16.mxu0 0
    %134 = vmatpush1.bf16.msra.mxu0 %v119
    %135 = vmatprep.subr.bf16.mxu0 0
    %136 = vmatpush1.bf16.msra.mxu0 0
    %137 = vmatprep.subr.bf16.mxu0 0
    %138 = vmatpush1.bf16.msra.mxu0 0
    %139 = vmatprep.subr.bf16.mxu0 0
    %140 = vmatpush1.bf16.msra.mxu0 0
    %141 = vmatprep.subr.bf16.mxu0 0
    %142 = vmatpush1.bf16.msra.mxu0 0
    %143 = vmatprep.subr.bf16.mxu0 0
    %144 = vmatpush1.bf16.msra.mxu0 0
    %145 = vmatprep.subr.bf16.mxu0 0
    %146 = vmatpush1.bf16.msra.mxu0 0
    %147 = vmatprep.subr.bf16.mxu0 0
    %148 = vmatpush1.bf16.msra.mxu0 0
    %149 = vmatprep.subr.bf16.mxu0 0
    %150 = vmatpush1.bf16.msra.mxu0 0
    %151 = vmatprep.subr.bf16.mxu0 0
    %152 = vmatpush1.bf16.msra.mxu0 0
    %153 = vmatprep.subr.bf16.mxu0 0
    %154 = vmatpush1.bf16.msra.mxu0 0
    %155 = vmatprep.subr.bf16.mxu0 0
    %156 = vmatpush1.bf16.msra.mxu0 0
    %157 = vmatprep.subr.bf16.mxu0 0
    %158 = vmatpush1.bf16.msra.mxu0 0
    %159 = vmatprep.subr.bf16.mxu0 0
    %160 = vmatpush1.bf16.msra.mxu0 0
    %161 = vmatprep.subr.bf16.mxu0 0
    %162 = vmatpush1.bf16.msra.mxu0 0
    %163 = vmatprep.mubr.bf16.mxu0 0
    %164 = vmatmul.mubr.bf16.gmra.mrb[0].mxu0 %v129
    %v165 = vpop.f32.mrb[0].mxu0
    %v166 = vadd.f32 %v125, %v165
    %v167 = vpop.f32.mrb[0].mxu0
    %v168 = vpop.f32.mrb[0].mxu0
    %v169 = vadd.f32 %v125, %v168
    %v170 = vpop.f32.mrb[0].mxu0
    %171 = vdwg.mxu0
    %v172 = vtanh.pop %v166
    %v173 = vtanh.pop %v169
    %v174 = vsel %vm127, %v172, 0.0
    %v175 = vsel %vm127, %v173, 0.0
    %176 = vst [vmem:[#allocation3] sm:$0xff] %v174
    %177 = vst [vmem:[#allocation3 + $0x8] sm:$0xff] %v175
    %v178 = vld [vmem:[%s1] sm:$0x3]
    %vm179 = vcmask 58368
    %v180 = vsel %vm179, %v178, 0.0
    %181 = vadd.xlane.f32.xlu0 %v180
    %v182 = vpop.xlane.xlu0 %181
    %v183 = vcvt.f32.s32.to.zero.pseudo %v182
    %vm184 = vcmp.lt.s32.totalorder %v183, 7
    %v185 = vsel %vm184, %v183, 7
    %v186 = vlaneseq
    %v187 = vshrl.u32 %v186, 7
    %v188 = vmul.u32 %v187, 8
    %v189 = vadd.s32 %v188, %v185
    %vm190 = vcmp.eq.s32.totalorder %v37, %v189
    %v191 = vsel %vm190, 1, 0
    %v192 = vcvt.s32.f32 %v191
    %vm193 = vcmask 130048
    %v195 = vsel %vm193, %v192, 0
    %197 = vmatprep.subr.mxu0 0.0
    %198 = vmatpush1.msra.mxu0 %v172
    %199 = vmatprep.subr.mxu0 0.0
    %200 = vmatpush1.msra.mxu0 %v173
    %201 = vmatprep.subr.mxu0 0.0
    %202 = vmatpush1.msra.mxu0 0.0
    %203 = vmatprep.subr.mxu0 0.0
    %204 = vmatpush1.msra.mxu0 0.0
    %205 = vmatprep.subr.mxu0 0.0
    %206 = vmatpush1.msra.mxu0 0.0
    %207 = vmatprep.subr.mxu0 0.0
    %208 = vmatpush1.msra.mxu0 0.0
    %209 = vmatprep.subr.mxu0 0.0
    %210 = vmatpush1.msra.mxu0 0.0
    %211 = vmatprep.subr.mxu0 0.0
    %212 = vmatpush1.msra.mxu0 0.0
    %213 = vmatprep.subr.mxu0 0.0
    %214 = vmatpush1.msra.mxu0 0.0
    %215 = vmatprep.subr.mxu0 0.0
    %216 = vmatpush1.msra.mxu0 0.0
    %217 = vmatprep.subr.mxu0 0.0
    %218 = vmatpush1.msra.mxu0 0.0
    %219 = vmatprep.subr.mxu0 0.0
    %220 = vmatpush1.msra.mxu0 0.0
    %221 = vmatprep.subr.mxu0 0.0
    %222 = vmatpush1.msra.mxu0 0.0
    %223 = vmatprep.subr.mxu0 0.0
    %224 = vmatpush1.msra.mxu0 0.0
    %225 = vmatprep.subr.mxu0 0.0
    %226 = vmatpush1.msra.mxu0 0.0
    %227 = vmatprep.subr.mxu0 0.0
    %228 = vmatpush1.msra.mxu0 0.0
    %229 = vmatprep.subr.mxu0 0.0
    %230 = vmatpush1.msra.mxu0 0.0
    %231 = vmatprep.subr.mxu0 0.0
    %232 = vmatpush1.msra.mxu0 0.0
    %233 = vmatprep.subr.mxu0 0.0
    %234 = vmatpush1.msra.mxu0 0.0
    %235 = vmatprep.subr.mxu0 0.0
    %236 = vmatpush1.msra.mxu0 0.0
    %237 = vmatprep.subr.mxu0 0.0
    %238 = vmatpush1.msra.mxu0 0.0
    %239 = vmatprep.subr.mxu0 0.0
    %240 = vmatpush1.msra.mxu0 0.0
    %241 = vmatprep.subr.mxu0 0.0
    %242 = vmatpush1.msra.mxu0 0.0
    %243 = vmatprep.subr.mxu0 0.0
    %244 = vmatpush1.msra.mxu0 0.0
    %245 = vmatprep.subr.mxu0 0.0
    %246 = vmatpush1.msra.mxu0 0.0
    %247 = vmatprep.subr.mxu0 0.0
    %248 = vmatpush1.msra.mxu0 0.0
    %249 = vmatprep.subr.mxu0 0.0
    %250 = vmatpush1.msra.mxu0 0.0
    %251 = vmatprep.subr.mxu0 0.0
    %252 = vmatpush1.msra.mxu0 0.0
    %253 = vmatprep.subr.mxu0 0.0
    %254 = vmatpush1.msra.mxu0 0.0
    %255 = vmatprep.subr.mxu0 0.0
    %256 = vmatpush1.msra.mxu0 0.0
    %257 = vmatprep.subr.mxu0 0.0
    %258 = vmatpush1.msra.mxu0 0.0
    %259 = vmatprep.subr.mxu0 0.0
    %260 = vmatpush1.msra.mxu0 0.0
    %261 = vmatprep.mubr.f32.mxu0 0.0
    %262 = vmatmul.mubr.f32.gmra.mrb[0].mxu0 %v195
    %v263 = vpop.f32.mrb[0].mxu0
    %v264 = vadd.f32 0.0, %v263
    %v265 = vpop.f32.mrb[0].mxu0
    %266 = vdwg.mxu0
    %v267 = vld [vmem:[%s5] sm:$0x1]
    %v269 = vlaneseq
    %v270 = vshrl.u32 %v269, 7
    %v271 = vsub.s32 0, %v270
    %v272 = vrot.slane %v267, %v271
    %v274 = vmul.f32 %v264, %v272
    %vm275 = vcmask 254976
    %v276 = vsel %vm275, %v274, 0.0
    %277 = vadd.xlane.f32.xlu0 %v276
    %v278 = vpop.xlane.xlu0 %277
    %s279 = sld [smem:[#allocation2]]
    %v280 = vstv %s279
    %v281 = vadd.f32 %v278, %v280
    %282 = vst [vmem:[#allocation5] sm:$0x3] %v281
    %v283 = vld [vmem:[%s6] sm:$0x3]
    %v284 = vmax.f32 %v281, 0.0
    %v285 = vmul.f32 %v281, %v283
    %v286 = vsub.f32 %v284, %v285
    %v287 = vand.u32 2147483647, %v281
    %v288 = vsub.f32 0.0, %v287
    %v289 = vmul.f32 %v288, 1.442695
    %v290 = vpow.pop %v289
    %v291 = vadd.f32 %v290, 1.0
    %v292 = vlog2.pop %v291
    %v293 = vmul.f32 %v292, 0.6931472
    %v294 = vadd.f32 %v286, %v293
    %vm295 = vcmask 1041408
    %v296 = vsel %vm295, %v294, 0.0
    %297 = vadd.xlane.f32.xlu0 %v296
    %v298 = vpop.xlane.xlu0 %297
    %v299 = vrot.slane %v298, 4
    %v300 = vadd.f32 %v298, %v299
    %v301 = vrot.slane %v300, 2
    %v302 = vadd.f32 %v300, %v301
    %v303 = vrot.slane %v302, 1
    %v304 = vadd.f32 %v302, %v303
    %s305 = vtos %v304
    %v306 = vrcp.pop 256.0
    %s307 = vtos %v306
    %s308 = smul.f32 %s305, %s307
    %v309 = vstv %s308
    %310 = vst [vmem:[#allocation7] sm:$0x1] %v309
    // Predicated region
    $region34: #{tpu_custom_call.1} parent=1 // pred_check
      _
    $region35: #{tpu_custom_call.1} parent=1 // pred_check_branch
      %312 = sbr.rel (0) target = $region37
    $region36: #{tpu_custom_call.1} parent=1 // pred_region
      %s314 = ssub.s32 256, 256
      %315 = vsyncadd [#allocation4], %s314
      %s316 = sshll.u32 [#allocation3], 4
      %s317 = int_to_ptr.vmem [resolvable:$true] %s316
      %322 = dma.vmem_to_hbm [thread:$0]  %s317, 256, %s8, [#allocation4], 128, 128, 8
    $region37: #{tpu_custom_call.1} parent=1 // pred_fallthru
      _
    // Predicated region
    $region38: #{tpu_custom_call.1} parent=1 // pred_check
      _
    $region39: #{tpu_custom_call.1} parent=1 // pred_check_branch
      %324 = sbr.rel (0) target = $region41
    $region40: #{tpu_custom_call.1} parent=1 // pred_region
      %s326 = ssub.s32 32, 32
      %327 = vsyncadd [#allocation6], %s326
      %s329 = sshll.u32 [#allocation5], 4
      %s330 = int_to_ptr.vmem [resolvable:$true] %s329
      %332 = dma.vmem_to_hbm [thread:$0]  %s330, 32, %s9, [#allocation6]
    $region41: #{tpu_custom_call.1} parent=1 // pred_fallthru
      _
    // Predicated region
    $region42: #{tpu_custom_call.1} parent=1 // pred_check
      _
    $region43: #{tpu_custom_call.1} parent=1 // pred_check_branch
      %334 = sbr.rel (0) target = $region45
    $region44: #{tpu_custom_call.1} parent=1 // pred_region
      %s336 = ssub.s32 16, 16
      %337 = vsyncadd [#allocation6], %s336
      %s339 = sshll.u32 [#allocation7], 4
      %s340 = int_to_ptr.vmem [resolvable:$true] %s339
      %342 = dma.vmem_to_hbm [thread:$0]  %s340, 16, %s10, [#allocation6]
    $region45: #{tpu_custom_call.1} parent=1 // pred_fallthru
      _
    // Predicated region
    $region46: #{tpu_custom_call.1} parent=1 // pred_check
      _
    $region47: #{tpu_custom_call.1} parent=1 // pred_check_branch
      %344 = sbr.rel (0) target = $region49
    $region48: #{tpu_custom_call.1} parent=1 // pred_region
      %345 = dma.done [#allocation4], 256
    $region49: #{tpu_custom_call.1} parent=1 // pred_fallthru
      _
    // Predicated region
    $region50: #{tpu_custom_call.1} parent=1 // pred_check
      _
    $region51: #{tpu_custom_call.1} parent=1 // pred_check_branch
      %347 = sbr.rel (0) target = $region53
    $region52: #{tpu_custom_call.1} parent=1 // pred_region
      %348 = dma.done [#allocation6], 32
    $region53: #{tpu_custom_call.1} parent=1 // pred_fallthru
      _
    // Predicated region
    $region54: #{tpu_custom_call.1} parent=1 // pred_check
      _
    $region55: #{tpu_custom_call.1} parent=1 // pred_check_branch
      %350 = sbr.rel (0) target = $region57
    $region56: #{tpu_custom_call.1} parent=1 // pred_region
      %351 = dma.done [#allocation6], 16
    $region57: #{tpu_custom_call.1} parent=1 // pred_fallthru
      _
    %352 = vsyncpa [#allocation4], 1
    %353 = vsyncpa [#allocation6], 1

</llo_original>
